<compile_context>
chip_gen: v5e
topology: v5e:2x2
jax: 0.10.0
libtpu: 0.0.40
codegen_flags: <defaults>
</compile_context>

<pallas_src>
import jax
import jax.numpy as jnp
import numpy as np
from jax.experimental import pallas as pl
from jax.experimental.pallas import tpu as pltpu

_H1, _H2 = 32, 128          # fc1 / fc2 output widths from the PyTorch module
_CHEAP_PAD_BYTES = 4 << 20  # below this x size, a tail pad is cheaper than caring


def _round_up(n, m):
    return ((n + m - 1) // m) * m


def _tpu_vmem_capacity():
    try:
        return int(pltpu.get_tpu_info().vmem_capacity_bytes)
    except Exception:
        return 128 << 20  # v5e/v6e physical VMEM; conservative fallback


def _plan_tiles(batch, d):
    """Pick (tile_b, num_tiles) for the 1-D batch grid."""
    vmem_cap = _tpu_vmem_capacity()
    # Small batch: a single 16-aligned tile; the (1, tile_b) output block is
    # the full output dim, so no 128-multiple requirement applies.
    b16 = _round_up(batch, 16)
    if b16 <= 256:
        return b16, 1
    # Multi-tile path: tile_b must be a multiple of 128 so the lane-dense
    # (1, tile_b) output block satisfies the lane-tiling constraint.
    x_budget = max(1 << 20, vmem_cap // 8)              # double-buffered f32 x tiles
    max_rows = max(128, (x_budget // (2 * d * 4)) // 128 * 128)
    tile = min(8192, max_rows)
    # Guarantee >= 2 tiles so the "parallel" batch axis can shard across the
    # two TensorCores on v7x (harmless on single-TC v5e/v6e).
    tile = min(tile, max(128, _round_up(pl.cdiv(batch, 2), 128)))
    num_tiles = pl.cdiv(batch, tile)
    return tile, num_tiles


def _mlp_kernel(x_ref, w1_ref, b1_ref, w2_ref, b2_ref, w3_ref, b3_ref, o_ref):
    """o[0, :] = sigmoid(relu(relu(x@W1+b1)@W2+b2) . w3 + b3) for one batch tile."""
    # Cast x to bf16 in-kernel (VPU) -> no extra wrapper-side HBM pass.
    x = x_ref[...].astype(jnp.bfloat16)                   # (TILE_B, D)

    # fc1: bf16 x bf16 MXU matmul, f32 accumulate; bias + ReLU in f32.
    h1 = jnp.dot(x, w1_ref[...], preferred_element_type=jnp.float32)
    h1 = jnp.maximum(h1 + b1_ref[...], 0.0)
    # dropout1: identity in eval/inference mode.

    # fc2: bf16 x bf16 MXU matmul (halves ext-slot passes vs f32), f32 accumulate.
    h2 = jnp.dot(h1.astype(jnp.bfloat16), w2_ref[...],
                 preferred_element_type=jnp.float32)
    h2 = jnp.maximum(h2 + b2_ref[...], 0.0)
    # dropout2: identity in eval/inference mode.

    # fc3: contract the 128-wide feature dim directly into a lane-dense
    # (rows, TILE_B) layout.  w3_ref is (8, 128) with the real weights in row 0
    # and zeros elsewhere (keeps the MXU LHS sublane-aligned).
    p3 = jax.lax.dot_general(w3_ref[...], h2, (((1,), (1,)), ((), ())),
                             preferred_element_type=jnp.float32)   # (8, TILE_B)
    logits = p3[0:1, :] + b3_ref[...]                               # (1, TILE_B)
    o_ref[...] = jax.nn.sigmoid(logits).astype(o_ref.dtype)


def neural_net_forward(x, params):
    """Forward pass.  x: (B, ...) flattened from dim 1; returns (B, 1) f32."""
    batch = x.shape[0]
    x_flat = x.reshape(batch, -1)          # metadata-only reshape
    d = x_flat.shape[1]

    tile_b, num_tiles = _plan_tiles(batch, d)
    b_pad = tile_b * num_tiles

    if b_pad != batch and (num_tiles == 1
                           or batch * d * x_flat.dtype.itemsize <= _CHEAP_PAD_BYTES):
        # Tiny inputs: a tail pad is negligible and keeps every block fully
        # in-bounds.  Large ragged batches skip this copy entirely and use a
        # Pallas partial last block instead (garbage tail rows are sliced off).
        x_flat = jnp.pad(x_flat, ((0, b_pad - batch), (0, 0)))

    # Resident parameters (constant index maps -> fetched once, stay in VMEM).
    w1 = params["w1"].astype(jnp.bfloat16)                         # (D, 32)
    b1 = params["b1"].reshape(1, _H1).astype(jnp.float32)          # (1, 32)
    w2 = params["w2"].astype(jnp.bfloat16)                         # (32, 128)
    b2 = params["b2"].reshape(1, _H2).astype(jnp.float32)          # (1, 128)
    w3 = jnp.pad(params["w3"].reshape(1, _H2).astype(jnp.float32),
                 ((0, 7), (0, 0)))                                 # (8, 128), row 0 real
    b3 = params["b3"].reshape(1, 1).astype(jnp.float32)            # (1, 1)

    const = lambda shape: pl.BlockSpec(shape, lambda i: (0, 0))

    # VMEM budget: double-buffered x/out tiles + resident params + f32/bf16
    # intermediates + headroom, clamped to the per-generation capacity
    # (~32 MiB cap on v7x's 64 MiB VMEM, up to 48 MiB on v5e/v6e).
    vmem_needed = int(
        2 * tile_b * d * 4                      # x tile (orig dtype <= f32), 2 bufs
        + 2 * tile_b * 4                        # out row tile (f32), 2 bufs
        + (d * _H1 + _H1 * _H2) * 2             # resident bf16 weights
        + (_H1 + _H2 + 8 * _H2 + 1) * 4         # biases + padded w3 block
        + tile_b * (_H1 * 6 + _H2 * 4)          # h1 f32/bf16 + h2 f32
        + (4 << 20))                            # headroom
    vmem_cap = min(48 << 20, _tpu_vmem_capacity() // 2)
    vmem_limit = int(min(max(vmem_needed, 16 << 20), vmem_cap))

    cost = pl.CostEstimate(
        flops=2 * b_pad * (d * _H1 + _H1 * _H2 + _H2),
        transcendentals=b_pad,
        bytes_accessed=(batch * d * x_flat.dtype.itemsize
                        + (d * _H1 + _H1 * _H2) * 2
                        + (_H1 + _H2 + 8 * _H2 + 1) * 4
                        + b_pad * 4),
    )

    out = pl.pallas_call(
        _mlp_kernel,
        out_shape=jax.ShapeDtypeStruct((1, b_pad), jnp.float32),
        grid=(num_tiles,),
        in_specs=[
            pl.BlockSpec((tile_b, d), lambda i: (i, 0)),   # x: tiled on batch
            const(w1.shape), const(b1.shape),              # params: VMEM-resident
            const(w2.shape), const(b2.shape),
            const(w3.shape), const(b3.shape),
        ],
        # Lane-dense output: batch along the 128-wide lane axis.
        out_specs=pl.BlockSpec((1, tile_b), lambda i: (0, i)),
        compiler_params=pltpu.CompilerParams(
            dimension_semantics=("parallel",),
            vmem_limit_bytes=vmem_limit,
        ),
        cost_estimate=cost,
    )(x_flat, w1, b1, w2, b2, w3, b3)

    return out[0, :batch].reshape(batch, 1)


def init_params(input_shape, key):
    """torch.nn.Linear-style init; weights stored as (in, out) for `x @ W`."""
    def linear(k, fan_in, fan_out):
        kw, kb = jax.random.split(k)
        bound = 1.0 / np.sqrt(fan_in)
        w = jax.random.uniform(kw, (fan_in, fan_out), jnp.float32, -bound, bound)
        b = jax.random.uniform(kb, (1, fan_out), jnp.float32, -bound, bound)
        return w, b

    k1, k2, k3 = jax.random.split(key, 3)
    w1, b1 = linear(k1, input_shape, _H1)
    w2, b2 = linear(k2, _H1, _H2)
    w3, b3 = linear(k3, _H2, 1)
    return {"w1": w1, "b1": b1, "w2": w2, "b2": b2, "w3": w3, "b3": b3}


def reference_forward(x, params):
    """Pure-JAX f32 reference (matches the original PyTorch eval semantics)."""
    batch = x.shape[0]
    h = x.reshape(batch, -1).astype(jnp.float32)
    h = jnp.maximum(h @ params["w1"] + params["b1"], 0.0)
    h = jnp.maximum(h @ params["w2"] + params["b2"], 0.0)
    return jax.nn.sigmoid(h @ params["w3"] + params["b3"])


if __name__ == "__main__":
    # Shapes consistent with the module: (batch, channels, seq) flattened from
    # dim 1 -> input_shape = channels * seq = 64.
    C, L = 4, 16
    input_shape = C * L

    key = jax.random.PRNGKey(0)
    kx1, kx2, kp = jax.random.split(key, 3)
    params = init_params(input_shape, kp)

    # 1) Tiny batch (single-tile path).
    x_small = jax.random.normal(kx1, (2, C, L), jnp.float32)
    out_small = jax.block_until_ready(neural_net_forward(x_small, params))
    ref_small = reference_forward(x_small, params)
    assert out_small.shape == (2, 1)
    np.testing.assert_allclose(np.asarray(out_small), np.asarray(ref_small),
                               rtol=2e-2, atol=2e-2)

    # 2) Larger batch exercising the multi-tile ("parallel") path with a
    #    ragged tail and the lane-dense output layout.
    x_big = jax.random.normal(kx2, (384, C, L), jnp.float32)
    out_big = jax.block_until_ready(neural_net_forward(x_big, params))
    ref_big = reference_forward(x_big, params)
    assert out_big.shape == (384, 1)
    np.testing.assert_allclose(np.asarray(out_big), np.asarray(ref_big),
                               rtol=2e-2, atol=2e-2)

    print("KERNEL_OK")
</pallas_src>

<mosaic_0001>
module attributes {stable_mosaic.version = 11 : i64} {
  func.func @_mlp_kernel(%arg0: i32, %arg1: memref<16x64xf32, #tpu.memory_space<vmem>>, %arg2: memref<64x32xbf16, #tpu.memory_space<vmem>>, %arg3: memref<1x32xf32, #tpu.memory_space<vmem>>, %arg4: memref<32x128xbf16, #tpu.memory_space<vmem>>, %arg5: memref<1x128xf32, #tpu.memory_space<vmem>>, %arg6: memref<8x128xf32, #tpu.memory_space<vmem>>, %arg7: memref<1x1xf32, #tpu.memory_space<vmem>>, %arg8: memref<1x16xf32, #tpu.memory_space<vmem>>) attributes {dimension_semantics = [#tpu.dimension_semantics<parallel>], iteration_bounds = array<i64: 1>, scalar_prefetch = 0 : i64, scratch_operands = 0 : i64, tpu.core_type = #tpu.core_type<tc>, window_params = [{transform_indices = @transform_0, window_bounds = array<i64: 16, 64>}, {pipeline_mode = #tpu.pipeline_mode<synchronous>, transform_indices = @transform_1, window_bounds = array<i64: 64, 32>}, {pipeline_mode = #tpu.pipeline_mode<synchronous>, transform_indices = @transform_2, window_bounds = array<i64: 1, 32>}, {pipeline_mode = #tpu.pipeline_mode<synchronous>, transform_indices = @transform_3, window_bounds = array<i64: 32, 128>}, {pipeline_mode = #tpu.pipeline_mode<synchronous>, transform_indices = @transform_4, window_bounds = array<i64: 1, 128>}, {pipeline_mode = #tpu.pipeline_mode<synchronous>, transform_indices = @transform_5, window_bounds = array<i64: 8, 128>}, {pipeline_mode = #tpu.pipeline_mode<synchronous>, transform_indices = @transform_6, window_bounds = array<i64: 1, 1>}, {transform_indices = @transform_7, window_bounds = array<i64: 1, 16>}]} {
    %c0 = arith.constant 0 : index
    %c0_0 = arith.constant 0 : index
    %0 = vector.load %arg1[%c0, %c0_0] : memref<16x64xf32, #tpu.memory_space<vmem>>, vector<16x64xf32>
    %1 = arith.truncf %0 : vector<16x64xf32> to vector<16x64xbf16>
    %c0_1 = arith.constant 0 : index
    %c0_2 = arith.constant 0 : index
    %2 = vector.load %arg2[%c0_1, %c0_2] : memref<64x32xbf16, #tpu.memory_space<vmem>>, vector<64x32xbf16>
    %cst = arith.constant dense<0.000000e+00> : vector<16x32xf32>
    %3 = tpu.matmul %1, %2, %cst {dimension_numbers = #tpu.dot_dimension_numbers<[1], [0], [0], [1], [0, 0, 1, 1], [], []>} : vector<16x64xbf16>, vector<64x32xbf16>, vector<16x32xf32> -> vector<16x32xf32>
    %c0_3 = arith.constant 0 : index
    %c0_4 = arith.constant 0 : index
    %4 = vector.load %arg3[%c0_3, %c0_4] : memref<1x32xf32, #tpu.memory_space<vmem>>, vector<1x32xf32>
    %5 = vector.broadcast %4 : vector<1x32xf32> to vector<16x32xf32>
    %6 = arith.addf %3, %5 : vector<16x32xf32>
    %cst_5 = arith.constant 0.000000e+00 : f32
    %7 = vector.broadcast %cst_5 : f32 to vector<16x32xf32>
    %8 = arith.maximumf %6, %7 : vector<16x32xf32>
    %9 = arith.truncf %8 : vector<16x32xf32> to vector<16x32xbf16>
    %c0_6 = arith.constant 0 : index
    %c0_7 = arith.constant 0 : index
    %10 = vector.load %arg4[%c0_6, %c0_7] : memref<32x128xbf16, #tpu.memory_space<vmem>>, vector<32x128xbf16>
    %cst_8 = arith.constant dense<0.000000e+00> : vector<16x128xf32>
    %11 = tpu.matmul %9, %10, %cst_8 {dimension_numbers = #tpu.dot_dimension_numbers<[1], [0], [0], [1], [0, 0, 1, 1], [], []>} : vector<16x32xbf16>, vector<32x128xbf16>, vector<16x128xf32> -> vector<16x128xf32>
    %c0_9 = arith.constant 0 : index
    %c0_10 = arith.constant 0 : index
    %12 = vector.load %arg5[%c0_9, %c0_10] : memref<1x128xf32, #tpu.memory_space<vmem>>, vector<1x128xf32>
    %13 = vector.broadcast %12 : vector<1x128xf32> to vector<16x128xf32>
    %14 = arith.addf %11, %13 : vector<16x128xf32>
    %cst_11 = arith.constant 0.000000e+00 : f32
    %15 = vector.broadcast %cst_11 : f32 to vector<16x128xf32>
    %16 = arith.maximumf %14, %15 : vector<16x128xf32>
    %c0_12 = arith.constant 0 : index
    %c0_13 = arith.constant 0 : index
    %17 = vector.load %arg6[%c0_12, %c0_13] : memref<8x128xf32, #tpu.memory_space<vmem>>, vector<8x128xf32>
    %cst_14 = arith.constant dense<0.000000e+00> : vector<8x16xf32>
    %18 = tpu.matmul %17, %16, %cst_14 {dimension_numbers = #tpu.dot_dimension_numbers<[1], [1], [0], [0], [0, 0, 1, 0], [], []>} : vector<8x128xf32>, vector<16x128xf32>, vector<8x16xf32> -> vector<8x16xf32>
    %19 = vector.extract_strided_slice %18 {offsets = [0, 0], sizes = [1, 16], strides = [1, 1]} : vector<8x16xf32> to vector<1x16xf32>
    %c0_15 = arith.constant 0 : index
    %c0_16 = arith.constant 0 : index
    %20 = vector.load %arg7[%c0_15, %c0_16] : memref<1x1xf32, #tpu.memory_space<vmem>>, vector<1x1xf32>
    %21 = vector.broadcast %20 : vector<1x1xf32> to vector<1x16xf32>
    %22 = arith.addf %19, %21 : vector<1x16xf32>
    %23 = arith.negf %22 : vector<1x16xf32>
    %24 = math.exp %23 : vector<1x16xf32>
    %cst_17 = arith.constant 1.000000e+00 : f32
    %25 = vector.broadcast %cst_17 : f32 to vector<1x16xf32>
    %26 = arith.addf %25, %24 : vector<1x16xf32>
    %27 = arith.divf %25, %26 : vector<1x16xf32>
    %c0_18 = arith.constant 0 : index
    %c0_19 = arith.constant 0 : index
    %28 = vector.load %arg8[%c0_18, %c0_19] : memref<1x16xf32, #tpu.memory_space<vmem>>, vector<1x16xf32>
    tpu.vector_store %arg8[%c0_18, %c0_19], %27 {strides = array<i32>} : memref<1x16xf32, #tpu.memory_space<vmem>>, vector<1x16xf32>,
    return
  }
  func.func @transform_0(%arg0: i32) -> (i32, i32) {
    %c0_i32 = arith.constant 0 : i32
    %c0_i32_0 = arith.constant 0 : i32
    return %arg0, %c0_i32 : i32, i32
  }
  func.func @transform_1(%arg0: i32) -> (i32, i32) {
    %c0_i32 = arith.constant 0 : i32
    %c0_i32_0 = arith.constant 0 : i32
    %c0_i32_1 = arith.constant 0 : i32
    return %c0_i32, %c0_i32_0 : i32, i32
  }
  func.func @transform_2(%arg0: i32) -> (i32, i32) {
    %c0_i32 = arith.constant 0 : i32
    %c0_i32_0 = arith.constant 0 : i32
    %c0_i32_1 = arith.constant 0 : i32
    return %c0_i32, %c0_i32_0 : i32, i32
  }
  func.func @transform_3(%arg0: i32) -> (i32, i32) {
    %c0_i32 = arith.constant 0 : i32
    %c0_i32_0 = arith.constant 0 : i32
    %c0_i32_1 = arith.constant 0 : i32
    return %c0_i32, %c0_i32_0 : i32, i32
  }
  func.func @transform_4(%arg0: i32) -> (i32, i32) {
    %c0_i32 = arith.constant 0 : i32
    %c0_i32_0 = arith.constant 0 : i32
    %c0_i32_1 = arith.constant 0 : i32
    return %c0_i32, %c0_i32_0 : i32, i32
  }
  func.func @transform_5(%arg0: i32) -> (i32, i32) {
    %c0_i32 = arith.constant 0 : i32
    %c0_i32_0 = arith.constant 0 : i32
    %c0_i32_1 = arith.constant 0 : i32
    return %c0_i32, %c0_i32_0 : i32, i32
  }
  func.func @transform_6(%arg0: i32) -> (i32, i32) {
    %c0_i32 = arith.constant 0 : i32
    %c0_i32_0 = arith.constant 0 : i32
    %c0_i32_1 = arith.constant 0 : i32
    return %c0_i32, %c0_i32_0 : i32, i32
  }
  func.func @transform_7(%arg0: i32) -> (i32, i32) {
    %c0_i32 = arith.constant 0 : i32
    %c0_i32_0 = arith.constant 0 : i32
    return %c0_i32, %arg0 : i32, i32
  }
}

</mosaic_0001>

<llo_original>
// kernel: tpu_custom_call.1
$region0: #{tpu_custom_call.1}
  #allocation0 [shape = 'u32[]', space=smem, size = 0x4, offset = 0x4, fixed_abs, tag = 'smem constant byte address 0x4 - core index']
  #allocation1 [shape = 'u32[72,128]{1,0:T(1,128)}', space=vmem, size = 0x9000, scoped, tag = 'internal scratch']
  #allocation2 [shape = 'f32[1,1]{1,0:T(1,128)S(1)}', space=vmem, size = 0x200, scoped, tag = 'scoped memory for tpu_custom_call.1']
  %s0 = inlined_call_operand.vmem [shape: f32[16,64], index: 0, kind: input, shape index: {}]
  %s1 = inlined_call_operand.vmem [shape: bf16[64,32], index: 1, kind: input, shape index: {}]
  %s2 = inlined_call_operand.vmem [shape: f32[1,32], index: 2, kind: input, shape index: {}]
  %s3 = inlined_call_operand.vmem [shape: bf16[32,128], index: 3, kind: input, shape index: {}]
  %s4 = inlined_call_operand.vmem [shape: f32[1,128], index: 4, kind: input, shape index: {}]
  %s5 = inlined_call_operand.vmem [shape: f32[8,128], index: 5, kind: input, shape index: {}]
  %s6 = inlined_call_operand.<no memory space> [shape: f32[1,1], index: 6, kind: input, shape index: {}]
  %s7 = inlined_call_operand.hbm [shape: f32[1,16], index: 7, kind: output, shape index: {}]
  %s8 = sld [smem:[#allocation0]]
  $region38: #{tpu_custom_call.1} parent=0
    _
  %s10 = ssub.s32 1, %s8
  %s11 = scalar_select 0, %s10, %s8
  %v12 = vstv %s6
  %13 = vst [vmem:[#allocation2] sm:$0x1] %v12
  $region1: #{tpu_custom_call.1} parent=0
    #allocation3 [shape = 'u8[512]{0}', space=vmem, size = 0x400, scoped, tag = 'output window, operand 0, single buffered']
    #allocation4 [shape = 's32[1]{0}', space=sflag, size = 0x4, scoped, tag = 'scoped memory for tpu_custom_call.1']
    %14 = vsyncpa [#allocation4], 0
    // Predicated region
    $region2: #{tpu_custom_call.1} parent=1 // pred_check
      _
    $region3: #{tpu_custom_call.1} parent=1 // pred_check_branch
      %16 = sbr.rel (0) target = $region5
    $region4: #{tpu_custom_call.1} parent=1 // pred_region
      _
    $region5: #{tpu_custom_call.1} parent=1 // pred_fallthru
      _
    // Predicated region
    $region6: #{tpu_custom_call.1} parent=1 // pred_check
      _
    $region7: #{tpu_custom_call.1} parent=1 // pred_check_branch
      %18 = sbr.rel (0) target = $region9
    $region8: #{tpu_custom_call.1} parent=1 // pred_region
      _
    $region9: #{tpu_custom_call.1} parent=1 // pred_fallthru
      _
    // Predicated region
    $region10: #{tpu_custom_call.1} parent=1 // pred_check
      _
    $region11: #{tpu_custom_call.1} parent=1 // pred_check_branch
      %20 = sbr.rel (0) target = $region13
    $region12: #{tpu_custom_call.1} parent=1 // pred_region
      _
    $region13: #{tpu_custom_call.1} parent=1 // pred_fallthru
      _
    // Predicated region
    $region14: #{tpu_custom_call.1} parent=1 // pred_check
      _
    $region15: #{tpu_custom_call.1} parent=1 // pred_check_branch
      %22 = sbr.rel (0) target = $region17
    $region16: #{tpu_custom_call.1} parent=1 // pred_region
      _
    $region17: #{tpu_custom_call.1} parent=1 // pred_fallthru
      _
    // Predicated region
    $region18: #{tpu_custom_call.1} parent=1 // pred_check
      _
    $region19: #{tpu_custom_call.1} parent=1 // pred_check_branch
      %24 = sbr.rel (0) target = $region21
    $region20: #{tpu_custom_call.1} parent=1 // pred_region
      _
    $region21: #{tpu_custom_call.1} parent=1 // pred_fallthru
      _
    // Predicated region
    $region22: #{tpu_custom_call.1} parent=1 // pred_check
      _
    $region23: #{tpu_custom_call.1} parent=1 // pred_check_branch
      %26 = sbr.rel (0) target = $region25
    $region24: #{tpu_custom_call.1} parent=1 // pred_region
      _
    $region25: #{tpu_custom_call.1} parent=1 // pred_fallthru
      _
    // Predicated region
    $region26: #{tpu_custom_call.1} parent=1 // pred_check
      _
    $region27: #{tpu_custom_call.1} parent=1 // pred_check_branch
      %28 = sbr.rel (0) target = $region29
    $region28: #{tpu_custom_call.1} parent=1 // pred_region
      _
    $region29: #{tpu_custom_call.1} parent=1 // pred_fallthru
      _
    %v30 = vld [vmem:[%s0] sm:$0xff]
    %v31 = vld [vmem:[%s0 + $0x8] sm:$0xff]
    %v32 = vpack.c.bf16 %v31, %v30
    %v33 = vld [vmem:[%s1] sm:$0xf]
    %v34 = vld [vmem:[%s1 + $0x4] sm:$0xf]
    %v35 = vld [vmem:[%s1 + $0x8] sm:$0xf]
    %v36 = vld [vmem:[%s1 + $0xc] sm:$0xf]
    %v37 = vld [vmem:[%s1 + $0x10] sm:$0xf]
    %v38 = vld [vmem:[%s1 + $0x14] sm:$0xf]
    %v39 = vld [vmem:[%s1 + $0x18] sm:$0xf]
    %v40 = vld [vmem:[%s1 + $0x1c] sm:$0xf]
    %v41 = vld [vmem:[%s2] sm:$0x1]
    %v43 = vperm.slane %v41, 0
    %v53 = vunpack.c.l.b16 %v33
    %v54 = vunpack.c.l.b16 %v34
    %v55 = vunpack.c.l.b16 %v35
    %v56 = vunpack.c.l.b16 %v36
    %v57 = vunpack.c.l.b16 %v37
    %v58 = vunpack.c.l.b16 %v38
    %v59 = vunpack.c.l.b16 %v39
    %v60 = vunpack.c.l.b16 %v40
    %v61 = vpack.c.b16 %v54, %v53
    %v62 = vpack.c.b16 %v56, %v55
    %v63 = vpack.c.b16 %v58, %v57
    %v64 = vpack.c.b16 %v60, %v59
    %vm69 = vcmask 523264
    %v71 = vsel %vm69, %v32, 0
    %73 = vmatpush.bf16.msra.mxu0 0
    %74 = vmatpush.bf16.msra.mxu0 0
    %75 = vmatpush.bf16.msra.mxu0 0
    %76 = vmatpush.bf16.msra.mxu0 0
    %77 = vmatpush.bf16.msra.mxu0 %v64
    %78 = vmatpush.bf16.msra.mxu0 %v63
    %79 = vmatpush.bf16.msra.mxu0 %v62
    %80 = vmatpush.bf16.msra.mxu0 %v61
    %81 = vmatmul.bf16.gmra.mxu0 %v71
    %v82 = vpop.f32.mrf.mxu0
    %v83 = vadd.f32 %v43, %v82
    %v84 = vpop.f32.mrf.mxu0
    %v85 = vadd.f32 %v43, %v84
    %86 = vdwg.mxu0
    %v87 = vmax.f32 %v83, 0.0
    %v88 = vmax.f32 %v85, 0.0
    %v89 = vpack.c.bf16 %v88, %v87
    %v90 = vld [vmem:[%s3] sm:$0xf]
    %v91 = vld [vmem:[%s3 + $0x4] sm:$0xf]
    %v92 = vld [vmem:[%s3 + $0x8] sm:$0xf]
    %v93 = vld [vmem:[%s3 + $0xc] sm:$0xf]
    %v94 = vld [vmem:[%s4] sm:$0x1]
    %v96 = vperm.slane %v94, 0
    %v102 = vunpack.c.l.b16 %v90
    %v103 = vunpack.c.l.b16 %v91
    %v104 = vunpack.c.l.b16 %v92
    %v105 = vunpack.c.l.b16 %v93
    %v106 = vpack.c.b16 %v103, %v102
    %v107 = vpack.c.b16 %v105, %v104
    %vm110 = vcmask 261120
    %v112 = vsel %vm110, %v89, 0
    %114 = vmatpush.bf16.msra.mxu0 0
    %115 = vmatpush.bf16.msra.mxu0 0
    %116 = vmatpush.bf16.msra.mxu0 0
    %117 = vmatpush.bf16.msra.mxu0 0
    %118 = vmatpush.bf16.msra.mxu0 0
    %119 = vmatpush.bf16.msra.mxu0 0
    %120 = vmatpush.bf16.msra.mxu0 %v107
    %121 = vmatpush.bf16.msra.mxu0 %v106
    %122 = vmatmul.bf16.gmra.mxu0 %v112
    %v123 = vpop.f32.mrf.mxu0
    %v124 = vadd.f32 %v96, %v123
    %v125 = vpop.f32.mrf.mxu0
    %v126 = vadd.f32 %v96, %v125
    %127 = vdwg.mxu0
    %v128 = vmax.f32 %v124, 0.0
    %v129 = vmax.f32 %v126, 0.0
    %v130 = vld [vmem:[%s5] sm:$0xff]
    %131 = vmatpush.xpose.msra.mxu0 0.0
    %132 = vmatpush.xpose.msra.mxu0 0.0
    %133 = vmatpush.xpose.msra.mxu0 0.0
    %134 = vmatpush.xpose.msra.mxu0 0.0
    %135 = vmatpush.xpose.msra.mxu0 0.0
    %136 = vmatpush.xpose.msra.mxu0 0.0
    %137 = vmatpush.xpose.msra.mxu0 0.0
    %138 = vmatpush.xpose.msra.mxu0 0.0
    %139 = vmatpush.xpose.msra.mxu0 0.0
    %140 = vmatpush.xpose.msra.mxu0 0.0
    %141 = vmatpush.xpose.msra.mxu0 0.0
    %142 = vmatpush.xpose.msra.mxu0 0.0
    %143 = vmatpush.xpose.msra.mxu0 0.0
    %144 = vmatpush.xpose.msra.mxu0 0.0
    %145 = vmatpush.xpose.msra.mxu0 %v129
    %146 = vmatpush.xpose.msra.mxu0 %v128
    %147 = vmatmul.f32.gmra.mxu0 %v130
    %v148 = vpop.f32.mrf.mxu0
    %v149 = vadd.f32 0.0, %v148
    %150 = vdwg.mxu0
    %v151 = vld [vmem:[#allocation2] sm:$0x1]
    %153 = vset.pattern.permute.xlu0 0
    %154 = vperm.xlu0 %153, %v151
    %v155 = vpop.permute.xlu0 %154
    %v157 = vperm.slane %v155, 0
    %v158 = vadd.f32 %v149, %v157
    %v159 = vxor.u32 %v158, 2147483648
    %v160 = vmul.f32 %v159, 1.442695
    %v161 = vpow.pop %v160
    %v162 = vadd.f32 %v161, 1.0
    %v163 = vrcp.pop %v162
    %v164 = vmul.f32 %v162, %v163
    %v165 = vsub.f32 1.0, %v164
    %v166 = vmul.f32 %v163, %v165
    %v167 = vadd.f32 %v163, %v166
    %vm168 = vweird.f32 %v162
    %vm169 = vweird.f32 %v163
    %vm170 = vmor %vm168, %vm169
    %v171 = vsel %vm170, %v163, %v167
    %v172 = vand.u32 2147483647, %v162
    %vm173 = vcmp.eq.f32.partialorder %v172, 8.507059e+37
    %v174 = vand.u32 %v162, 2147483648
    %v175 = vor.u32 1.1754944e-38, %v174
    %v176 = vsel %vm173, %v175, %v171
    %v177 = vmul.f32 1.0, %v176
    %vm178 = vcmask 122880
    %179 = vst.msk [vmem:[#allocation3] sm:$0x1] %vm178, %v177
    // Predicated region
    $region30: #{tpu_custom_call.1} parent=1 // pred_check
      _
    $region31: #{tpu_custom_call.1} parent=1 // pred_check_branch
      %181 = sbr.rel (0) target = $region33
    $region32: #{tpu_custom_call.1} parent=1 // pred_region
      %183 = vsyncadd [#allocation4], 0
      %s185 = sshll.u32 [#allocation3], 4
      %s186 = int_to_ptr.vmem [resolvable:$true] %s185
      %s187 = sshll.u32 %s7, 4
      %s188 = int_to_ptr.hbm [resolvable:$true] %s187
      %190 = dma.vmem_to_hbm [thread:$0]  %s186, 16, %s188, [#allocation4]
    $region33: #{tpu_custom_call.1} parent=1 // pred_fallthru
      _
    // Predicated region
    $region34: #{tpu_custom_call.1} parent=1 // pred_check
      _
    $region35: #{tpu_custom_call.1} parent=1 // pred_check_branch
      %192 = sbr.rel (0) target = $region37
    $region36: #{tpu_custom_call.1} parent=1 // pred_region
      %194 = dma.done [#allocation4], 16
    $region37: #{tpu_custom_call.1} parent=1 // pred_fallthru
      _
    %195 = vsyncpa [#allocation4], 1

</llo_original>
